<compile_context>
chip_gen: v7x
topology: tpu7x:2x2x1
jax: 0.10.0
libtpu: 0.0.40
codegen_flags: <defaults>
</compile_context>

<pallas_src>
import functools

import jax
import jax.numpy as jnp
from jax.experimental import pallas as pl
from jax.experimental.pallas import tpu as pltpu


def _round_up(x, m):
    return (x + m - 1) // m * m


def _complex_conv_kernel(xr_ref, xi_ref, w_ref, b_ref, o_ref, *, c_out):
    """One grid step.

    xr_ref/xi_ref: (1, K_pad, tm)  real/imag patch blocks (K on sublanes,
                                    spatial tile on lanes -> lane-dense).
    w_ref:         (2*c_out, K_pad) fused [Wr; Wi] weights (resident).
    b_ref:         (2*c_out, 1)     fused [b_r - b_i; b_r + b_i] bias (resident).
    o_ref:         (1, 2*c_out, tm) fused [real; imag] output block.
    """
    w = w_ref[...]                                                   # (2C, Kp)
    # Two MXU pushes replace the original four (fused real/imag weights).
    a = jnp.dot(w, xr_ref[0], preferred_element_type=jnp.float32)    # (2C, tm)
    b = jnp.dot(w, xi_ref[0], preferred_element_type=jnp.float32)    # (2C, tm)
    bias = b_ref[...]                                                # (2C, 1)
    # a[:C] = Wr.Xr, a[C:] = Wi.Xr ; b[:C] = Wr.Xi, b[C:] = Wi.Xi
    o_ref[0, :c_out, :] = a[:c_out] - b[c_out:] + bias[:c_out]       # real part
    o_ref[0, c_out:, :] = b[:c_out] + a[c_out:] + bias[c_out:]       # imag part
    # NOTE: for large channel counts (MXU-bound regime) the 3-mult Gauss trick
    # (t1=Xr.Wr, t2=Xi.Wi, t3=(Xr+Xi).(Wr+Wi)) saves 25% MXU cycles; at small C
    # the kernel is memory/overhead bound so the 2-dot fused form is preferred.


def _im2col_3d_T(x, k, p):
    """x: (N, C, D, H, W) float32 -> (N, C*k^3, D*H*W) patch matrix.

    K index = ci*k^3 + (kd*k^2 + kh*k + kw)  (matches w.reshape(C_out, C_in*k^3))
    spatial index = d*H*W + h*W + w. Pure row-major reshapes — no XLA transpose.
    """
    N, C, D, H, W = x.shape
    xp = jnp.pad(x, ((0, 0), (0, 0), (p, p), (p, p), (p, p)))
    taps = []
    for kd in range(k):
        for kh in range(k):
            for kw in range(k):
                taps.append(xp[:, :, kd:kd + D, kh:kh + H, kw:kw + W])
    pat = jnp.stack(taps, axis=2)                     # (N, C, k^3, D, H, W)
    return pat.reshape(N, C * k * k * k, D * H * W)   # row-major merges


def complex_conv3d(x, w_r, b_r, w_i, b_i, *, tm=512):
    """x: complex64 (N, C_in, D, H, W); w_*: (C_out, C_in, k, k, k); b_*: (C_out,).

    tm: spatial row tile (lane dim of the output blocks); any multiple of 128.
    """
    N, C_in, D, H, W = x.shape
    C_out, _, k, _, _ = w_r.shape
    assert tm % 128 == 0, "tm must be a multiple of 128 (lane width)"
    # Same-shape padding only holds for odd kernel sizes (matches the module's
    # intended use); even k / stride != 1 would change the output shape.
    assert k % 2 == 1, "ComplexConv3d same-shape padding requires odd kernel_size"
    p = (k - 1) // 2

    K = C_in * k ** 3
    S = D * H * W
    K_pad = _round_up(K, 8)          # align contraction dim to sublanes
    n_tiles = pl.cdiv(S, tm)         # cdiv + padding instead of divisibility assert
    S_pad = n_tiles * tm

    # Patch matrices in the kernel-friendly (K, S) layout.
    xr = _im2col_3d_T(jnp.real(x).astype(jnp.float32), k, p)   # (N, K, S)
    xi = _im2col_3d_T(jnp.imag(x).astype(jnp.float32), k, p)   # (N, K, S)
    if (K_pad, S_pad) != (K, S):
        pad = ((0, 0), (0, K_pad - K), (0, S_pad - S))
        xr = jnp.pad(xr, pad)
        xi = jnp.pad(xi, pad)

    # Fused weights [Wr; Wi] and fused biases [b_r - b_i; b_r + b_i].
    w_cat = jnp.concatenate(
        [w_r.reshape(C_out, K), w_i.reshape(C_out, K)], axis=0).astype(jnp.float32)
    if K_pad != K:
        w_cat = jnp.pad(w_cat, ((0, 0), (0, K_pad - K)))
    b_cat = jnp.concatenate([b_r - b_i, b_r + b_i]).reshape(2 * C_out, 1)
    b_cat = b_cat.astype(jnp.float32)

    x_spec = pl.BlockSpec((1, K_pad, tm), lambda n, i: (n, 0, i))
    w_spec = pl.BlockSpec((2 * C_out, K_pad), lambda n, i: (0, 0))   # resident
    b_spec = pl.BlockSpec((2 * C_out, 1), lambda n, i: (0, 0))       # resident
    o_spec = pl.BlockSpec((1, 2 * C_out, tm), lambda n, i: (n, 0, i))

    # Explicit VMEM budget (bytes): double-buffered xr/xi input blocks and the
    # output block, plus the resident fused weight/bias. Clamped below v7x's
    # 64 MiB physical VMEM so large tm stays safe on every generation.
    blk_bytes = 4 * (
        2 * (2 * K_pad * tm)            # xr + xi blocks, 2 buffers each
        + 2 * (2 * C_out * tm)          # output block, 2 buffers
        + 2 * C_out * K_pad             # fused weights (resident)
        + 2 * C_out)                    # fused bias (resident)
    vmem_limit = int(min(max(4 * blk_bytes, 16 * 2 ** 20), 60 * 2 ** 20))

    kernel = functools.partial(_complex_conv_kernel, c_out=C_out)
    out = pl.pallas_call(
        kernel,
        out_shape=jax.ShapeDtypeStruct((N, 2 * C_out, S_pad), jnp.float32),
        grid_spec=pltpu.PrefetchScalarGridSpec(
            num_scalar_prefetch=0,
            grid=(N, n_tiles),                    # 2-D parallel grid: feeds both
            in_specs=[x_spec, x_spec, w_spec, b_spec],   # v7x TensorCores
            out_specs=o_spec),
        compiler_params=pltpu.CompilerParams(
            dimension_semantics=("parallel", "parallel"),
            vmem_limit_bytes=vmem_limit),
    )(xr, xi, w_cat, b_cat)

    # (N, 2C, S_pad) already matches NCDHW ordering -> no transpose, just slice
    # off the spatial padding and split real/imag channel halves.
    out_r = out[:, :C_out, :S].reshape(N, C_out, D, H, W)
    out_i = out[:, C_out:, :S].reshape(N, C_out, D, H, W)
    return jax.lax.complex(out_r, out_i)


def _conv3d_ref(x, w, b, p):
    """Plain-JAX reference for a single real nn.Conv3d (NCDHW)."""
    y = jax.lax.conv_general_dilated(
        x, w, window_strides=(1, 1, 1), padding=[(p, p)] * 3,
        dimension_numbers=("NCDHW", "OIDHW", "NCDHW"))
    return y + b[None, :, None, None, None]


if __name__ == "__main__":
    key = jax.random.PRNGKey(0)
    N, C_in, C_out, k = 2, 3, 4, 3
    D = H = W = 12               # S = 1728 -> padded to 4 tiles of 512 (cdiv path)
    p = (k - 1) // 2

    ks = jax.random.split(key, 6)
    fan_in = C_in * k ** 3
    bound = 1.0 / (fan_in ** 0.5)

    x_real = jax.random.normal(ks[0], (N, C_in, D, H, W), jnp.float32)
    x_imag = jax.random.normal(ks[1], (N, C_in, D, H, W), jnp.float32)
    x = jax.lax.complex(x_real, x_imag)

    # Deterministic "Conv3d" parameters (PyTorch-style uniform(-1/sqrt(fan_in), +)).
    w_r = jax.random.uniform(ks[2], (C_out, C_in, k, k, k), jnp.float32, -bound, bound)
    w_i = jax.random.uniform(ks[3], (C_out, C_in, k, k, k), jnp.float32, -bound, bound)
    b_r = jax.random.uniform(ks[4], (C_out,), jnp.float32, -bound, bound)
    b_i = jax.random.uniform(ks[5], (C_out,), jnp.float32, -bound, bound)

    out = complex_conv3d(x, w_r, b_r, w_i, b_i, tm=512)
    out = jax.block_until_ready(out)

    # Independent reference: exactly the PyTorch forward semantics.
    ref_real = _conv3d_ref(x_real, w_r, b_r, p) - _conv3d_ref(x_imag, w_i, b_i, p)
    ref_imag = _conv3d_ref(x_imag, w_r, b_r, p) + _conv3d_ref(x_real, w_i, b_i, p)

    assert out.shape == (N, C_out, D, H, W) and out.dtype == jnp.complex64
    assert jnp.allclose(jnp.real(out), ref_real, atol=1e-4, rtol=1e-4)
    assert jnp.allclose(jnp.imag(out), ref_imag, atol=1e-4, rtol=1e-4)

    print("KERNEL_OK")
</pallas_src>

<mosaic_0001>
module attributes {stable_mosaic.version = 11 : i64} {
  func.func @_complex_conv_kernel(%arg0: i32, %arg1: i32, %arg2: memref<1x88x512xf32, #tpu.memory_space<vmem>>, %arg3: memref<1x88x512xf32, #tpu.memory_space<vmem>>, %arg4: memref<8x88xf32, #tpu.memory_space<vmem>>, %arg5: memref<8x1xf32, #tpu.memory_space<vmem>>, %arg6: memref<1x8x512xf32, #tpu.memory_space<vmem>>) attributes {dimension_semantics = [#tpu.dimension_semantics<parallel>, #tpu.dimension_semantics<parallel>], iteration_bounds = array<i64: 2, 4>, scalar_prefetch = 0 : i64, scratch_operands = 0 : i64, tpu.core_type = #tpu.core_type<tc>, window_params = [{transform_indices = @transform_0, window_bounds = array<i64: 1, 88, 512>}, {transform_indices = @transform_1, window_bounds = array<i64: 1, 88, 512>}, {pipeline_mode = #tpu.pipeline_mode<synchronous>, transform_indices = @transform_2, window_bounds = array<i64: 8, 88>}, {pipeline_mode = #tpu.pipeline_mode<synchronous>, transform_indices = @transform_3, window_bounds = array<i64: 8, 1>}, {transform_indices = @transform_4, window_bounds = array<i64: 1, 8, 512>}]} {
    %c0 = arith.constant 0 : index
    %c0_0 = arith.constant 0 : index
    %0 = vector.load %arg4[%c0, %c0_0] : memref<8x88xf32, #tpu.memory_space<vmem>>, vector<8x88xf32>
    %c0_1 = arith.constant 0 : index
    %c0_2 = arith.constant 0 : index
    %c0_3 = arith.constant 0 : index
    %1 = vector.load %arg2[%c0_1, %c0_2, %c0_3] : memref<1x88x512xf32, #tpu.memory_space<vmem>>, vector<1x88x512xf32>
    %2 = vector.shape_cast %1 : vector<1x88x512xf32> to vector<88x512xf32>
    %cst = arith.constant dense<0.000000e+00> : vector<8x512xf32>
    %3 = tpu.matmul %0, %2, %cst {dimension_numbers = #tpu.dot_dimension_numbers<[1], [0], [0], [1], [0, 0, 1, 1], [], []>} : vector<8x88xf32>, vector<88x512xf32>, vector<8x512xf32> -> vector<8x512xf32>
    %c0_4 = arith.constant 0 : index
    %c0_5 = arith.constant 0 : index
    %c0_6 = arith.constant 0 : index
    %4 = vector.load %arg3[%c0_4, %c0_5, %c0_6] : memref<1x88x512xf32, #tpu.memory_space<vmem>>, vector<1x88x512xf32>
    %5 = vector.shape_cast %4 : vector<1x88x512xf32> to vector<88x512xf32>
    %cst_7 = arith.constant dense<0.000000e+00> : vector<8x512xf32>
    %6 = tpu.matmul %0, %5, %cst_7 {dimension_numbers = #tpu.dot_dimension_numbers<[1], [0], [0], [1], [0, 0, 1, 1], [], []>} : vector<8x88xf32>, vector<88x512xf32>, vector<8x512xf32> -> vector<8x512xf32>
    %c0_8 = arith.constant 0 : index
    %c0_9 = arith.constant 0 : index
    %7 = vector.load %arg5[%c0_8, %c0_9] : memref<8x1xf32, #tpu.memory_space<vmem>>, vector<8x1xf32>
    %8 = vector.extract_strided_slice %3 {offsets = [0, 0], sizes = [4, 512], strides = [1, 1]} : vector<8x512xf32> to vector<4x512xf32>
    %9 = vector.extract_strided_slice %6 {offsets = [4, 0], sizes = [4, 512], strides = [1, 1]} : vector<8x512xf32> to vector<4x512xf32>
    %10 = arith.subf %8, %9 : vector<4x512xf32>
    %11 = vector.extract_strided_slice %7 {offsets = [0, 0], sizes = [4, 1], strides = [1, 1]} : vector<8x1xf32> to vector<4x1xf32>
    %12 = vector.broadcast %11 : vector<4x1xf32> to vector<4x512xf32>
    %13 = arith.addf %10, %12 : vector<4x512xf32>
    %c0_10 = arith.constant 0 : index
    %c0_11 = arith.constant 0 : index
    %c0_12 = arith.constant 0 : index
    %14 = vector.load %arg6[%c0_10, %c0_11, %c0_12] : memref<1x8x512xf32, #tpu.memory_space<vmem>>, vector<1x4x512xf32>
    %15 = vector.shape_cast %14 : vector<1x4x512xf32> to vector<4x512xf32>
    %16 = vector.shape_cast %13 : vector<4x512xf32> to vector<1x4x512xf32>
    tpu.vector_store %arg6[%c0_10, %c0_11, %c0_12], %16 {strides = array<i32>} : memref<1x8x512xf32, #tpu.memory_space<vmem>>, vector<1x4x512xf32>,
    %17 = vector.extract_strided_slice %6 {offsets = [0, 0], sizes = [4, 512], strides = [1, 1]} : vector<8x512xf32> to vector<4x512xf32>
    %18 = vector.extract_strided_slice %3 {offsets = [4, 0], sizes = [4, 512], strides = [1, 1]} : vector<8x512xf32> to vector<4x512xf32>
    %19 = arith.addf %17, %18 : vector<4x512xf32>
    %20 = vector.extract_strided_slice %7 {offsets = [4, 0], sizes = [4, 1], strides = [1, 1]} : vector<8x1xf32> to vector<4x1xf32>
    %21 = vector.broadcast %20 : vector<4x1xf32> to vector<4x512xf32>
    %22 = arith.addf %19, %21 : vector<4x512xf32>
    %c0_13 = arith.constant 0 : index
    %c4 = arith.constant 4 : index
    %c0_14 = arith.constant 0 : index
    %23 = vector.load %arg6[%c0_13, %c4, %c0_14] : memref<1x8x512xf32, #tpu.memory_space<vmem>>, vector<1x4x512xf32>
    %24 = vector.shape_cast %23 : vector<1x4x512xf32> to vector<4x512xf32>
    %25 = vector.shape_cast %22 : vector<4x512xf32> to vector<1x4x512xf32>
    tpu.vector_store %arg6[%c0_13, %c4, %c0_14], %25 {strides = array<i32>} : memref<1x8x512xf32, #tpu.memory_space<vmem>>, vector<1x4x512xf32>,
    return
  }
  func.func @transform_0(%arg0: i32, %arg1: i32) -> (i32, i32, i32) {
    %c0_i32 = arith.constant 0 : i32
    %c0_i32_0 = arith.constant 0 : i32
    return %arg0, %c0_i32, %arg1 : i32, i32, i32
  }
  func.func @transform_1(%arg0: i32, %arg1: i32) -> (i32, i32, i32) {
    %c0_i32 = arith.constant 0 : i32
    %c0_i32_0 = arith.constant 0 : i32
    return %arg0, %c0_i32, %arg1 : i32, i32, i32
  }
  func.func @transform_2(%arg0: i32, %arg1: i32) -> (i32, i32) {
    %c0_i32 = arith.constant 0 : i32
    %c0_i32_0 = arith.constant 0 : i32
    %c0_i32_1 = arith.constant 0 : i32
    return %c0_i32, %c0_i32_0 : i32, i32
  }
  func.func @transform_3(%arg0: i32, %arg1: i32) -> (i32, i32) {
    %c0_i32 = arith.constant 0 : i32
    %c0_i32_0 = arith.constant 0 : i32
    %c0_i32_1 = arith.constant 0 : i32
    return %c0_i32, %c0_i32_0 : i32, i32
  }
  func.func @transform_4(%arg0: i32, %arg1: i32) -> (i32, i32, i32) {
    %c0_i32 = arith.constant 0 : i32
    %c0_i32_0 = arith.constant 0 : i32
    return %arg0, %c0_i32, %arg1 : i32, i32, i32
  }
}

</mosaic_0001>

<llo_original>
// kernel: tpu_custom_call.1
$region0: #{tpu_custom_call.1}
  #allocation0 [shape = 'u32[]', space=smem, size = 0x4, offset = 0x4, fixed_abs, tag = 'smem constant byte address 0x4 - core index']
  #allocation1 [shape = 'u32[144,128]{1,0:T(1,128)}', space=vmem, size = 0x12000, scoped, tag = 'internal scratch']
  %s0 = inlined_call_operand.hbm [shape: f32[2,88,2048], index: 0, kind: input, shape index: {}]
  %s1 = inlined_call_operand.hbm [shape: f32[2,88,2048], index: 1, kind: input, shape index: {}]
  %s2 = inlined_call_operand.hbm [shape: f32[8,88], index: 2, kind: input, shape index: {}]
  %s3 = inlined_call_operand.vmem [shape: f32[8,1], index: 3, kind: input, shape index: {}]
  %s4 = inlined_call_operand.hbm [shape: f32[2,8,2048], index: 4, kind: output, shape index: {}]
  %s5 = sld [smem:[#allocation0]]
  $region61: #{tpu_custom_call.1} parent=0
    _
  %s7 = ssub.s32 1, %s5
  %s8 = scalar_select 0, %s7, %s5
  $region1: #{tpu_custom_call.1} parent=0
    #allocation2 [shape = 'u8[360448]{0}', space=vmem, size = 0x58000, scoped, tag = 'input window, operand 0']
    #allocation3 [shape = 's32[2]{0}', space=sflag, size = 0x8, scoped, tag = 'scoped memory for tpu_custom_call.1']
    #allocation4 [shape = 's32[2]{0}', space=sflag, size = 0x8, scoped, tag = 'scoped memory for tpu_custom_call.1']
    #allocation5 [shape = 'u8[360448]{0}', space=vmem, size = 0x58000, scoped, tag = 'input window, operand 1']
    #allocation6 [shape = 's32[2]{0}', space=sflag, size = 0x8, scoped, tag = 'scoped memory for tpu_custom_call.1']
    #allocation7 [shape = 'u8[4096]{0}', space=vmem, size = 0x1000, scoped, tag = 'input window, operand 2, single buffered']
    #allocation8 [shape = 'u8[32768]{0}', space=vmem, size = 0x8000, scoped, tag = 'output window, operand 0']
    %9 = vsyncpa [#allocation3], 0
    %s10 = scalar_lea.sflag [#allocation3], 1
    %11 = vsyncpa %s10, 0
    %12 = vsyncpa [#allocation6], 0
    %s13 = scalar_lea.sflag [#allocation6], 1
    %14 = vsyncpa %s13, 0
    %15 = vsyncpa [#allocation4], 0
    %s16 = scalar_lea.sflag [#allocation4], 1
    %17 = vsyncpa %s16, 0
    loop: start=0, step=1, limit=10
    $region2: #{tpu_custom_call.1} parent=1 // loop_pre_header
      _
    $region3: #{tpu_custom_call.1} parent=1 // loop_header
      %s19 = sphi 0, %s23
      %p20 = scmp.ge.s32.totalorder %s19, 10
      %s26 = sphi 0, %s38
      %s27 = sphi 0, %s34
      %s28 = sphi 0, %s26
      %s29 = sphi 0, %s27
      %s30 = sphi 0, %s28
      %s31 = sphi 0, %s29
      %s43 = sphi 0, %s45
      %s46 = sphi 0, %s43
      %s47 = sphi 0, %s46
      %s63 = sphi 0, %s47
      %s71 = sphi 0, %s73
      %s74 = sphi 0, %s71
      %s75 = sphi 0, %s74
      %s91 = sphi 0, %s75
      %s95 = sphi 0, %s95
      %s97 = sphi 0, %s95
      %s98 = sphi 0, %s97
      %s112 = sphi 0, %s98
      %s116 = sphi 0, %s116
      %s118 = sphi 0, %s116
      %s119 = sphi 0, %s118
      %s133 = sphi 0, %s119
      %s141 = sphi 0, %s143
      %s144 = sphi 0, %s141
      %s145 = sphi 0, %s144
      %s161 = sphi 0, %s145
    $region4: #{tpu_custom_call.1} parent=1 // loop_header_branch
      %22 = sbr.rel (%p20) target = $region8
    $region5: #{tpu_custom_call.1} parent=1 // loop_body
      %s24 = ssub.s32 %s19, 1
      %s25 = ssub.s32 %s19, 2
      %s32 = sadd.s32 1, %s27
      %p33 = scmp.ge.s32.totalorder %s32, 4
      %s34 = scalar_select %p33, 0, %s32
      %s35 = sadd.s32 1, %s26
      %s36 = scalar_select %p33, %s35, %s26
      %p37 = scmp.ge.s32.totalorder %s36, 2
      %s38 = scalar_select %p37, 0, %s36
      %s39 = ssub.s32 %s26, %s38
      %s40 = ssub.s32 %s27, %s34
      %s41 = sor.u32 %s39, %s40
      %p42 = scmp.eq.s32.totalorder %s41, 0
      %s44 = sadd.s32 %s43, 1
      %s45 = scalar_select %p42, %s43, %s44
      %p48 = pneg %p42
      %p49 = scmp.eq.s32.totalorder %s19, 7
      %p50 = por %p48, %p49
      %p51 = scmp.ne.s32.totalorder %s43, %s46
      %p52 = scmp.eq.s32.totalorder %s19, 0
      %p53 = por %p51, %p52
      %p54 = scmp.ne.s32.totalorder %s43, %s46
      %p55 = scmp.eq.s32.totalorder %s24, 7
      %p56 = por %p54, %p55
      %p57 = scmp.ne.s32.totalorder %s46, %s47
      %p58 = scmp.eq.s32.totalorder %s24, 0
      %p59 = por %p57, %p58
      %p60 = scmp.ne.s32.totalorder %s46, %s47
      %p61 = scmp.eq.s32.totalorder %s25, 7
      %p62 = por %p60, %p61
      %p64 = scmp.ne.s32.totalorder %s47, %s63
      %p65 = scmp.eq.s32.totalorder %s25, 0
      %p66 = por %p64, %p65
      %s67 = ssub.s32 %s26, %s38
      %s68 = ssub.s32 %s27, %s34
      %s69 = sor.u32 %s67, %s68
      %p70 = scmp.eq.s32.totalorder %s69, 0
      %s72 = sadd.s32 %s71, 1
      %s73 = scalar_select %p70, %s71, %s72
      %p76 = pneg %p70
      %p77 = scmp.eq.s32.totalorder %s19, 7
      %p78 = por %p76, %p77
      %p79 = scmp.ne.s32.totalorder %s71, %s74
      %p80 = scmp.eq.s32.totalorder %s19, 0
      %p81 = por %p79, %p80
      %p82 = scmp.ne.s32.totalorder %s71, %s74
      %p83 = scmp.eq.s32.totalorder %s24, 7
      %p84 = por %p82, %p83
      %p85 = scmp.ne.s32.totalorder %s74, %s75
      %p86 = scmp.eq.s32.totalorder %s24, 0
      %p87 = por %p85, %p86
      %p88 = scmp.ne.s32.totalorder %s74, %s75
      %p89 = scmp.eq.s32.totalorder %s25, 7
      %p90 = por %p88, %p89
      %p92 = scmp.ne.s32.totalorder %s75, %s91
      %p93 = scmp.eq.s32.totalorder %s25, 0
      %p94 = por %p92, %p93
      %s96 = sadd.s32 %s95, 1
      %p99 = scmp.eq.s32.totalorder %s19, 7
      %p100 = scmp.ne.s32.totalorder %s95, %s97
      %p101 = scmp.eq.s32.totalorder %s19, 0
      %p102 = por %p100, %p101
      %p103 = scmp.ne.s32.totalorder %s95, %s97
      %p104 = scmp.eq.s32.totalorder %s24, 7
      %p105 = por %p103, %p104
      %p106 = scmp.ne.s32.totalorder %s97, %s98
      %p107 = scmp.eq.s32.totalorder %s24, 0
      %p108 = por %p106, %p107
      %p109 = scmp.ne.s32.totalorder %s97, %s98
      %p110 = scmp.eq.s32.totalorder %s25, 7
      %p111 = por %p109, %p110
      %p113 = scmp.ne.s32.totalorder %s98, %s112
      %p114 = scmp.eq.s32.totalorder %s25, 0
      %p115 = por %p113, %p114
      %s117 = sadd.s32 %s116, 1
      %p120 = scmp.eq.s32.totalorder %s19, 7
      %p121 = scmp.ne.s32.totalorder %s116, %s118
      %p122 = scmp.eq.s32.totalorder %s19, 0
      %p123 = por %p121, %p122
      %p124 = scmp.ne.s32.totalorder %s116, %s118
      %p125 = scmp.eq.s32.totalorder %s24, 7
      %p126 = por %p124, %p125
      %p127 = scmp.ne.s32.totalorder %s118, %s119
      %p128 = scmp.eq.s32.totalorder %s24, 0
      %p129 = por %p127, %p128
      %p130 = scmp.ne.s32.totalorder %s118, %s119
      %p131 = scmp.eq.s32.totalorder %s25, 7
      %p132 = por %p130, %p131
      %p134 = scmp.ne.s32.totalorder %s119, %s133
      %p135 = scmp.eq.s32.totalorder %s25, 0
      %p136 = por %p134, %p135
      %s137 = ssub.s32 %s26, %s38
      %s138 = ssub.s32 %s27, %s34
      %s139 = sor.u32 %s137, %s138
      %p140 = scmp.eq.s32.totalorder %s139, 0
      %s142 = sadd.s32 %s141, 1
      %s143 = scalar_select %p140, %s141, %s142
      %p146 = pneg %p140
      %p147 = scmp.eq.s32.totalorder %s19, 7
      %p148 = por %p146, %p147
      %p149 = scmp.ne.s32.totalorder %s141, %s144
      %p150 = scmp.eq.s32.totalorder %s19, 0
      %p151 = por %p149, %p150
      %p152 = scmp.ne.s32.totalorder %s141, %s144
      %p153 = scmp.eq.s32.totalorder %s24, 7
      %p154 = por %p152, %p153
      %p155 = scmp.ne.s32.totalorder %s144, %s145
      %p156 = scmp.eq.s32.totalorder %s24, 0
      %p157 = por %p155, %p156
      %p158 = scmp.ne.s32.totalorder %s144, %s145
      %p159 = scmp.eq.s32.totalorder %s25, 7
      %p160 = por %p158, %p159
      %p162 = scmp.ne.s32.totalorder %s145, %s161
      %p163 = scmp.eq.s32.totalorder %s25, 0
      %p164 = por %p162, %p163
      %p165 = scmp.le.s32.totalorder 1, %s19
      %p166 = scmp.lt.s32.totalorder %s19, 9
      %p167 = pnand %p165, %p166
      %p168 = pneg %p167
      // Predicated region
      $region9: #{tpu_custom_call.1} parent=5 // pred_check
        _
      $region10: #{tpu_custom_call.1} parent=5 // pred_check_branch
        %170 = sbr.rel (%p167) target = $region12
      $region11: #{tpu_custom_call.1} parent=5 // pred_region
        %s171 = ssub.s32 %s19, 1
        // Predicated region
        $region13: #{tpu_custom_call.1} parent=11 // pred_check
          %p172 = pneg %p108
        $region14: #{tpu_custom_call.1} parent=11 // pred_check_branch
          %174 = sbr.rel (%p172) target = $region16
        $region15: #{tpu_custom_call.1} parent=11 // pred_region
          %s176 = ssub.s32 128, 128
          %177 = vsyncadd [#allocation6], %s176
          %s179 = sshll.u32 [#allocation7], 4
          %s180 = int_to_ptr.vmem [resolvable:$true] %s179
          %182 = dma.hbm_to_vmem [thread:$0]  %s2, 128, %s180, [#allocation6]
        $region16: #{tpu_custom_call.1} parent=11 // pred_fallthru
          _
        // Predicated region
        $region17: #{tpu_custom_call.1} parent=11 // pred_check
          %p183 = pneg %p129
        $region18: #{tpu_custom_call.1} parent=11 // pred_check_branch
          %185 = sbr.rel (%p183) target = $region20
        $region19: #{tpu_custom_call.1} parent=11 // pred_region
          _
        $region20: #{tpu_custom_call.1} parent=11 // pred_fallthru
          _
      $region12: #{tpu_custom_call.1} parent=5 // pred_fallthru
        _
      %p186 = scmp.lt.s32.totalorder %s19, 8
      // Predicated region
      $region21: #{tpu_custom_call.1} parent=5 // pred_check
        %p187 = pneg %p186
      $region22: #{tpu_custom_call.1} parent=5 // pred_check_branch
        %189 = sbr.rel (%p187) target = $region24
      $region23: #{tpu_custom_call.1} parent=5 // pred_region
        // Predicated region
        $region25: #{tpu_custom_call.1} parent=23 // pred_check
          %p190 = pneg %p53
        $region26: #{tpu_custom_call.1} parent=23 // pred_check_branch
          %192 = sbr.rel (%p190) target = $region28
        $region27: #{tpu_custom_call.1} parent=23 // pred_region
          %s193 = sand.u32 %s43, 1
          %s194 = scalar_lea.sflag [#allocation3], %s193
          %s195 = sand.u32 %s43, 1
          %s196 = smul.addr %s195, 352
          %s197 = scalar_lea.vmem [#allocation2], %s196
          %s198 = smul.u32 4, %s27
          %s200 = ssub.s32 5632, 5632
          %201 = vsyncadd %s194, %s200
          %s202 = smul.addr %s26, 176
          %s203 = sadd.s32 %s198, %s202
          %s204 = smul.addr %s203, 128
          %s205 = scalar_lea.hbm %s0, %s204
          %s206 = sshll.u32 %s197, 4
          %s207 = int_to_ptr.vmem [resolvable:$true] %s206
          %212 = dma.hbm_to_vmem [thread:$0]  %s205, 5632, %s207, %s194, 2048, 512, 32
        $region28: #{tpu_custom_call.1} parent=23 // pred_fallthru
          _
        // Predicated region
        $region29: #{tpu_custom_call.1} parent=23 // pred_check
          %p213 = pneg %p81
        $region30: #{tpu_custom_call.1} parent=23 // pred_check_branch
          %215 = sbr.rel (%p213) target = $region32
        $region31: #{tpu_custom_call.1} parent=23 // pred_region
          %s216 = sand.u32 %s19, 1
          %s217 = scalar_lea.sflag [#allocation6], %s216
          %s218 = sand.u32 %s71, 1
          %s219 = smul.addr %s218, 352
          %s220 = scalar_lea.vmem [#allocation5], %s219
          %s221 = smul.u32 4, %s27
          %s223 = ssub.s32 5632, 5632
          %224 = vsyncadd %s217, %s223
          %s225 = smul.addr %s26, 176
          %s226 = sadd.s32 %s221, %s225
          %s227 = smul.addr %s226, 128
          %s228 = scalar_lea.hbm %s1, %s227
          %s229 = sshll.u32 %s220, 4
          %s230 = int_to_ptr.vmem [resolvable:$true] %s229
          %235 = dma.hbm_to_vmem [thread:$0]  %s228, 5632, %s230, %s217, 2048, 512, 32
        $region32: #{tpu_custom_call.1} parent=23 // pred_fallthru
          _
      $region24: #{tpu_custom_call.1} parent=5 // pred_fallthru
        _
      %p236 = scmp.le.s32.totalorder 1, %s19
      %p237 = scmp.lt.s32.totalorder %s19, 9
      %p238 = pnand %p236, %p237
      %p239 = pneg %p238
      // Predicated region
      $region33: #{tpu_custom_call.1} parent=5 // pred_check
        _
      $region34: #{tpu_custom_call.1} parent=5 // pred_check_branch
        %241 = sbr.rel (%p238) target = $region36
      $region35: #{tpu_custom_call.1} parent=5 // pred_region
        %s242 = ssub.s32 %s19, 1
        %s243 = sand.u32 %s46, 1
        %s244 = scalar_lea.sflag [#allocation3], %s243
        %s245 = sand.u32 %s46, 1
        %s246 = smul.addr %s245, 352
        %s247 = scalar_lea.vmem [#allocation2], %s246
        // Predicated region
        $region37: #{tpu_custom_call.1} parent=35 // pred_check
          %p248 = pneg %p59
        $region38: #{tpu_custom_call.1} parent=35 // pred_check_branch
          %250 = sbr.rel (%p248) target = $region40
        $region39: #{tpu_custom_call.1} parent=35 // pred_region
          %251 = dma.done %s244, 5632
        $region40: #{tpu_custom_call.1} parent=35 // pred_fallthru
          _
        %s252 = sand.u32 %s24, 1
        %s253 = scalar_lea.sflag [#allocation6], %s252
        %s254 = sand.u32 %s74, 1
        %s255 = smul.addr %s254, 352
        %s256 = scalar_lea.vmem [#allocation5], %s255
        // Predicated region
        $region41: #{tpu_custom_call.1} parent=35 // pred_check
          %p257 = pneg %p87
        $region42: #{tpu_custom_call.1} parent=35 // pred_check_branch
          %259 = sbr.rel (%p257) target = $region44
        $region43: #{tpu_custom_call.1} parent=35 // pred_region
          %260 = dma.done %s253, 5632
        $region44: #{tpu_custom_call.1} parent=35 // pred_fallthru
          _
        // Predicated region
        $region45: #{tpu_custom_call.1} parent=35 // pred_check
          %p261 = pneg %p108
        $region46: #{tpu_custom_call.1} parent=35 // pred_check_branch
          %263 = sbr.rel (%p261) target = $region48
        $region47: #{tpu_custom_call.1} parent=35 // pred_region
          %264 = dma.done [#allocation6], 128
        $region48: #{tpu_custom_call.1} parent=35 // pred_fallthru
          _
        %s265 = sand.u32 %s46, 1
        %s266 = scalar_lea.sflag [#allocation3], %s265
        %s267 = sand.u32 %s46, 1
        %s268 = smul.addr %s267, 352
        %s269 = scalar_lea.vmem [#allocation2], %s268
        %p270 = pneg %p59
        %p271 = pneg %p56
        %s272 = sand.u32 %s24, 1
        %s273 = scalar_lea.sflag [#allocation6], %s272
        %s274 = sand.u32 %s74, 1
        %s275 = smul.addr %s274, 352
        %s276 = scalar_lea.vmem [#allocation5], %s275
        %p277 = pneg %p87
        %p278 = pneg %p84
        %p279 = pneg %p108
        %p280 = pneg %p105
        %p281 = pneg %p129
        %p282 = pneg %p126
        %p283 = pneg %p157
        %p284 = pneg %p154
        %s285 = sand.u32 %s144, 1
        %s286 = scalar_lea.sflag [#allocation4], %s285
        %s287 = sand.u32 %s144, 1
        %s288 = smul.addr %s287, 32
        %s289 = scalar_lea.vmem [#allocation8], %s288
        %s290 = smul.u32 4, %s29
        %s291 = smul.u32 4, %s29
        %s292 = smul.u32 4, %s29
        %v293 = vld [vmem:[#allocation7] sm:$0xff]
        %v294 = vld [vmem:[%s247] sm:$0xff]
        %v295 = vld [vmem:[%s247 + $0x8] sm:$0xff]
        %v296 = vld [vmem:[%s247 + $0x10] sm:$0xff]
        %v297 = vld [vmem:[%s247 + $0x18] sm:$0xff]
        %v298 = vld [vmem:[%s247 + $0x20] sm:$0xff]
        %v299 = vld [vmem:[%s247 + $0x28] sm:$0xff]
        %v300 = vld [vmem:[%s247 + $0x30] sm:$0xff]
        %v301 = vld [vmem:[%s247 + $0x38] sm:$0xff]
        %v302 = vld [vmem:[%s247 + $0x40] sm:$0xff]
        %v303 = vld [vmem:[%s247 + $0x48] sm:$0xff]
        %v304 = vld [vmem:[%s247 + $0x50] sm:$0xff]
        %v305 = vld [vmem:[%s247 + $0x58] sm:$0xff]
        %v306 = vld [vmem:[%s247 + $0x60] sm:$0xff]
        %v307 = vld [vmem:[%s247 + $0x68] sm:$0xff]
        %v308 = vld [vmem:[%s247 + $0x70] sm:$0xff]
        %v309 = vld [vmem:[%s247 + $0x78] sm:$0xff]
        %v310 = vld [vmem:[%s247 + $0x80] sm:$0xff]
        %v311 = vld [vmem:[%s247 + $0x88] sm:$0xff]
        %v312 = vld [vmem:[%s247 + $0x90] sm:$0xff]
        %v313 = vld [vmem:[%s247 + $0x98] sm:$0xff]
        %v314 = vld [vmem:[%s247 + $0xa0] sm:$0xff]
        %v315 = vld [vmem:[%s247 + $0xa8] sm:$0xff]
        %v316 = vld [vmem:[%s247 + $0xb0] sm:$0xff]
        %v317 = vld [vmem:[%s247 + $0xb8] sm:$0xff]
        %v318 = vld [vmem:[%s247 + $0xc0] sm:$0xff]
        %v319 = vld [vmem:[%s247 + $0xc8] sm:$0xff]
        %v320 = vld [vmem:[%s247 + $0xd0] sm:$0xff]
        %v321 = vld [vmem:[%s247 + $0xd8] sm:$0xff]
        %v322 = vld [vmem:[%s247 + $0xe0] sm:$0xff]
        %v323 = vld [vmem:[%s247 + $0xe8] sm:$0xff]
        %v324 = vld [vmem:[%s247 + $0xf0] sm:$0xff]
        %v325 = vld [vmem:[%s247 + $0xf8] sm:$0xff]
        %v326 = vld [vmem:[%s247 + $0x100] sm:$0xff]
        %v327 = vld [vmem:[%s247 + $0x108] sm:$0xff]
        %v328 = vld [vmem:[%s247 + $0x110] sm:$0xff]
        %v329 = vld [vmem:[%s247 + $0x118] sm:$0xff]
        %v330 = vld [vmem:[%s247 + $0x120] sm:$0xff]
        %v331 = vld [vmem:[%s247 + $0x128] sm:$0xff]
        %v332 = vld [vmem:[%s247 + $0x130] sm:$0xff]
        %v333 = vld [vmem:[%s247 + $0x138] sm:$0xff]
        %v334 = vld [vmem:[%s247 + $0x140] sm:$0xff]
        %v335 = vld [vmem:[%s247 + $0x148] sm:$0xff]
        %v336 = vld [vmem:[%s247 + $0x150] sm:$0xff]
        %v337 = vld [vmem:[%s247 + $0x158] sm:$0xff]
        %vm338 = vcmask 719872
        %v340 = vsel %vm338, %v293, 0
        %342 = vmatprep.subr.mxu0 %v295
        %343 = vmatpush1.msra.mxu0 %v294
        %344 = vmatprep.subr.mxu0 %v299
        %345 = vmatpush1.msra.mxu0 %v298
        %346 = vmatprep.subr.mxu0 %v303
        %347 = vmatpush1.msra.mxu0 %v302
        %348 = vmatprep.subr.mxu0 %v307
        %349 = vmatpush1.msra.mxu0 %v306
        %350 = vmatprep.subr.mxu0 %v311
        %351 = vmatpush1.msra.mxu0 %v310
        %352 = vmatprep.subr.mxu0 %v315
        %353 = vmatpush1.msra.mxu0 %v314
        %354 = vmatprep.subr.mxu0 %v319
        %355 = vmatpush1.msra.mxu0 %v318
        %356 = vmatprep.subr.mxu0 %v323
        %357 = vmatpush1.msra.mxu0 %v322
        %358 = vmatprep.subr.mxu0 %v327
        %359 = vmatpush1.msra.mxu0 %v326
        %360 = vmatprep.subr.mxu0 %v331
        %361 = vmatpush1.msra.mxu0 %v330
        %362 = vmatprep.subr.mxu0 %v335
        %363 = vmatpush1.msra.mxu0 %v334
        %364 = vmatprep.subr.mxu0 0.0
        %365 = vmatpush1.msra.mxu0 0.0
        %366 = vmatprep.subr.mxu0 0.0
        %367 = vmatpush1.msra.mxu0 0.0
        %368 = vmatprep.subr.mxu0 0.0
        %369 = vmatpush1.msra.mxu0 0.0
        %370 = vmatprep.subr.mxu0 0.0
        %371 = vmatpush1.msra.mxu0 0.0
        %372 = vmatprep.subr.mxu0 0.0
        %373 = vmatpush1.msra.mxu0 0.0
        %374 = vmatprep.subr.mxu0 0.0
        %375 = vmatpush1.msra.mxu0 0.0
        %376 = vmatprep.subr.mxu0 0.0
        %377 = vmatpush1.msra.mxu0 0.0
        %378 = vmatprep.subr.mxu0 0.0
        %379 = vmatpush1.msra.mxu0 0.0
        %380 = vmatprep.subr.mxu0 0.0
        %381 = vmatpush1.msra.mxu0 0.0
        %382 = vmatprep.subr.mxu0 0.0
        %383 = vmatpush1.msra.mxu0 0.0
        %384 = vmatprep.subr.mxu0 0.0
        %385 = vmatpush1.msra.mxu0 0.0
        %386 = vmatprep.subr.mxu0 0.0
        %387 = vmatpush1.msra.mxu0 0.0
        %388 = vmatprep.subr.mxu0 0.0
        %389 = vmatpush1.msra.mxu0 0.0
        %390 = vmatprep.subr.mxu0 0.0
        %391 = vmatpush1.msra.mxu0 0.0
        %392 = vmatprep.subr.mxu0 0.0
        %393 = vmatpush1.msra.mxu0 0.0
        %394 = vmatprep.subr.mxu0 0.0
        %395 = vmatpush1.msra.mxu0 0.0
        %396 = vmatprep.subr.mxu0 0.0
        %397 = vmatpush1.msra.mxu0 0.0
        %398 = vmatprep.subr.mxu0 0.0
        %399 = vmatpush1.msra.mxu0 0.0
        %400 = vmatprep.subr.mxu0 0.0
        %401 = vmatpush1.msra.mxu0 0.0
        %402 = vmatprep.subr.mxu0 0.0
        %403 = vmatpush1.msra.mxu0 0.0
        %404 = vmatprep.subr.mxu0 0.0
        %405 = vmatpush1.msra.mxu0 0.0
        %406 = vmatprep.mubr.f32.mxu0 0.0
        %407 = vmatmul.mubr.f32.gmra.mrb[0].mxu0 %v340
        %v408 = vpop.f32.mrb[0].mxu0
        %v409 = vadd.f32 0.0, %v408
        %v410 = vpop.f32.mrb[0].mxu0
        %v411 = vadd.f32 0.0, %v410
        %412 = vdwg.mxu0
        %413 = vmatprep.subr.mxu0 %v297
        %414 = vmatpush1.msra.mxu0 %v296
        %415 = vmatprep.subr.mxu0 %v301
        %416 = vmatpush1.msra.mxu0 %v300
        %417 = vmatprep.subr.mxu0 %v305
        %418 = vmatpush1.msra.mxu0 %v304
        %419 = vmatprep.subr.mxu0 %v309
        %420 = vmatpush1.msra.mxu0 %v308
        %421 = vmatprep.subr.mxu0 %v313
        %422 = vmatpush1.msra.mxu0 %v312
        %423 = vmatprep.subr.mxu0 %v317
        %424 = vmatpush1.msra.mxu0 %v316
        %425 = vmatprep.subr.mxu0 %v321
        %426 = vmatpush1.msra.mxu0 %v320
        %427 = vmatprep.subr.mxu0 %v325
        %428 = vmatpush1.msra.mxu0 %v324
        %429 = vmatprep.subr.mxu0 %v329
        %430 = vmatpush1.msra.mxu0 %v328
        %431 = vmatprep.subr.mxu0 %v333
        %432 = vmatpush1.msra.mxu0 %v332
        %433 = vmatprep.subr.mxu0 %v337
        %434 = vmatpush1.msra.mxu0 %v336
        %435 = vmatprep.subr.mxu0 0.0
        %436 = vmatpush1.msra.mxu0 0.0
        %437 = vmatprep.subr.mxu0 0.0
        %438 = vmatpush1.msra.mxu0 0.0
        %439 = vmatprep.subr.mxu0 0.0
        %440 = vmatpush1.msra.mxu0 0.0
        %441 = vmatprep.subr.mxu0 0.0
        %442 = vmatpush1.msra.mxu0 0.0
        %443 = vmatprep.subr.mxu0 0.0
        %444 = vmatpush1.msra.mxu0 0.0
        %445 = vmatprep.subr.mxu0 0.0
        %446 = vmatpush1.msra.mxu0 0.0
        %447 = vmatprep.subr.mxu0 0.0
        %448 = vmatpush1.msra.mxu0 0.0
        %449 = vmatprep.subr.mxu0 0.0
        %450 = vmatpush1.msra.mxu0 0.0
        %451 = vmatprep.subr.mxu0 0.0
        %452 = vmatpush1.msra.mxu0 0.0
        %453 = vmatprep.subr.mxu0 0.0
        %454 = vmatpush1.msra.mxu0 0.0
        %455 = vmatprep.subr.mxu0 0.0
        %456 = vmatpush1.msra.mxu0 0.0
        %457 = vmatprep.subr.mxu0 0.0
        %458 = vmatpush1.msra.mxu0 0.0
        %459 = vmatprep.subr.mxu0 0.0
        %460 = vmatpush1.msra.mxu0 0.0
        %461 = vmatprep.subr.mxu0 0.0
        %462 = vmatpush1.msra.mxu0 0.0
        %463 = vmatprep.subr.mxu0 0.0
        %464 = vmatpush1.msra.mxu0 0.0
        %465 = vmatprep.subr.mxu0 0.0
        %466 = vmatpush1.msra.mxu0 0.0
        %467 = vmatprep.subr.mxu0 0.0
        %468 = vmatpush1.msra.mxu0 0.0
        %469 = vmatprep.subr.mxu0 0.0
        %470 = vmatpush1.msra.mxu0 0.0
        %471 = vmatprep.subr.mxu0 0.0
        %472 = vmatpush1.msra.mxu0 0.0
        %473 = vmatprep.subr.mxu0 0.0
        %474 = vmatpush1.msra.mxu0 0.0
        %475 = vmatprep.subr.mxu0 0.0
        %476 = vmatpush1.msra.mxu0 0.0
        %477 = vmatprep.mubr.f32.mxu0 0.0
        %478 = vmatmul.mubr.f32.gmra.mrb[0].mxu0 %v340
        %v479 = vpop.f32.mrb[0].mxu0
        %v480 = vadd.f32 0.0, %v479
        %v481 = vpop.f32.mrb[0].mxu0
        %v482 = vadd.f32 0.0, %v481
        %483 = vdwg.mxu0
        %v484 = vld [vmem:[%s256] sm:$0xff]
        %v485 = vld [vmem:[%s256 + $0x8] sm:$0xff]
        %v486 = vld [vmem:[%s256 + $0x10] sm:$0xff]
        %v487 = vld [vmem:[%s256 + $0x18] sm:$0xff]
        %v488 = vld [vmem:[%s256 + $0x20] sm:$0xff]
        %v489 = vld [vmem:[%s256 + $0x28] sm:$0xff]
        %v490 = vld [vmem:[%s256 + $0x30] sm:$0xff]
        %v491 = vld [vmem:[%s256 + $0x38] sm:$0xff]
        %v492 = vld [vmem:[%s256 + $0x40] sm:$0xff]
        %v493 = vld [vmem:[%s256 + $0x48] sm:$0xff]
        %v494 = vld [vmem:[%s256 + $0x50] sm:$0xff]
        %v495 = vld [vmem:[%s256 + $0x58] sm:$0xff]
        %v496 = vld [vmem:[%s256 + $0x60] sm:$0xff]
        %v497 = vld [vmem:[%s256 + $0x68] sm:$0xff]
        %v498 = vld [vmem:[%s256 + $0x70] sm:$0xff]
        %v499 = vld [vmem:[%s256 + $0x78] sm:$0xff]
        %v500 = vld [vmem:[%s256 + $0x80] sm:$0xff]
        %v501 = vld [vmem:[%s256 + $0x88] sm:$0xff]
        %v502 = vld [vmem:[%s256 + $0x90] sm:$0xff]
        %v503 = vld [vmem:[%s256 + $0x98] sm:$0xff]
        %v504 = vld [vmem:[%s256 + $0xa0] sm:$0xff]
        %v505 = vld [vmem:[%s256 + $0xa8] sm:$0xff]
        %v506 = vld [vmem:[%s256 + $0xb0] sm:$0xff]
        %v507 = vld [vmem:[%s256 + $0xb8] sm:$0xff]
        %v508 = vld [vmem:[%s256 + $0xc0] sm:$0xff]
        %v509 = vld [vmem:[%s256 + $0xc8] sm:$0xff]
        %v510 = vld [vmem:[%s256 + $0xd0] sm:$0xff]
        %v511 = vld [vmem:[%s256 + $0xd8] sm:$0xff]
        %v512 = vld [vmem:[%s256 + $0xe0] sm:$0xff]
        %v513 = vld [vmem:[%s256 + $0xe8] sm:$0xff]
        %v514 = vld [vmem:[%s256 + $0xf0] sm:$0xff]
        %v515 = vld [vmem:[%s256 + $0xf8] sm:$0xff]
        %v516 = vld [vmem:[%s256 + $0x100] sm:$0xff]
        %v517 = vld [vmem:[%s256 + $0x108] sm:$0xff]
        %v518 = vld [vmem:[%s256 + $0x110] sm:$0xff]
        %v519 = vld [vmem:[%s256 + $0x118] sm:$0xff]
        %v520 = vld [vmem:[%s256 + $0x120] sm:$0xff]
        %v521 = vld [vmem:[%s256 + $0x128] sm:$0xff]
        %v522 = vld [vmem:[%s256 + $0x130] sm:$0xff]
        %v523 = vld [vmem:[%s256 + $0x138] sm:$0xff]
        %v524 = vld [vmem:[%s256 + $0x140] sm:$0xff]
        %v525 = vld [vmem:[%s256 + $0x148] sm:$0xff]
        %v526 = vld [vmem:[%s256 + $0x150] sm:$0xff]
        %v527 = vld [vmem:[%s256 + $0x158] sm:$0xff]
        %528 = vmatprep.subr.mxu0 %v485
        %529 = vmatpush1.msra.mxu0 %v484
        %530 = vmatprep.subr.mxu0 %v489
        %531 = vmatpush1.msra.mxu0 %v488
        %532 = vmatprep.subr.mxu0 %v493
        %533 = vmatpush1.msra.mxu0 %v492
        %534 = vmatprep.subr.mxu0 %v497
        %535 = vmatpush1.msra.mxu0 %v496
        %536 = vmatprep.subr.mxu0 %v501
        %537 = vmatpush1.msra.mxu0 %v500
        %538 = vmatprep.subr.mxu0 %v505
        %539 = vmatpush1.msra.mxu0 %v504
        %540 = vmatprep.subr.mxu0 %v509
        %541 = vmatpush1.msra.mxu0 %v508
        %542 = vmatprep.subr.mxu0 %v513
        %543 = vmatpush1.msra.mxu0 %v512
        %544 = vmatprep.subr.mxu0 %v517
        %545 = vmatpush1.msra.mxu0 %v516
        %546 = vmatprep.subr.mxu0 %v521
        %547 = vmatpush1.msra.mxu0 %v520
        %548 = vmatprep.subr.mxu0 %v525
        %549 = vmatpush1.msra.mxu0 %v524
        %550 = vmatprep.subr.mxu0 0.0
        %551 = vmatpush1.msra.mxu0 0.0
        %552 = vmatprep.subr.mxu0 0.0
        %553 = vmatpush1.msra.mxu0 0.0
        %554 = vmatprep.subr.mxu0 0.0
        %555 = vmatpush1.msra.mxu0 0.0
        %556 = vmatprep.subr.mxu0 0.0
        %557 = vmatpush1.msra.mxu0 0.0
        %558 = vmatprep.subr.mxu0 0.0
        %559 = vmatpush1.msra.mxu0 0.0
        %560 = vmatprep.subr.mxu0 0.0
        %561 = vmatpush1.msra.mxu0 0.0
        %562 = vmatprep.subr.mxu0 0.0
        %563 = vmatpush1.msra.mxu0 0.0
        %564 = vmatprep.subr.mxu0 0.0
        %565 = vmatpush1.msra.mxu0 0.0
        %566 = vmatprep.subr.mxu0 0.0
        %567 = vmatpush1.msra.mxu0 0.0
        %568 = vmatprep.subr.mxu0 0.0
        %569 = vmatpush1.msra.mxu0 0.0
        %570 = vmatprep.subr.mxu0 0.0
        %571 = vmatpush1.msra.mxu0 0.0
        %572 = vmatprep.subr.mxu0 0.0
        %573 = vmatpush1.msra.mxu0 0.0
        %574 = vmatprep.subr.mxu0 0.0
        %575 = vmatpush1.msra.mxu0 0.0
        %576 = vmatprep.subr.mxu0 0.0
        %577 = vmatpush1.msra.mxu0 0.0
        %578 = vmatprep.subr.mxu0 0.0
        %579 = vmatpush1.msra.mxu0 0.0
        %580 = vmatprep.subr.mxu0 0.0
        %581 = vmatpush1.msra.mxu0 0.0
        %582 = vmatprep.subr.mxu0 0.0
        %583 = vmatpush1.msra.mxu0 0.0
        %584 = vmatprep.subr.mxu0 0.0
        %585 = vmatpush1.msra.mxu0 0.0
        %586 = vmatprep.subr.mxu0 0.0
        %587 = vmatpush1.msra.mxu0 0.0
        %588 = vmatprep.subr.mxu0 0.0
        %589 = vmatpush1.msra.mxu0 0.0
        %590 = vmatprep.subr.mxu0 0.0
        %591 = vmatpush1.msra.mxu0 0.0
        %592 = vmatprep.mubr.f32.mxu0 0.0
        %593 = vmatmul.mubr.f32.gmra.mrb[0].mxu0 %v340
        %v594 = vpop.f32.mrb[0].mxu0
        %v595 = vadd.f32 0.0, %v594
        %v596 = vpop.f32.mrb[0].mxu0
        %v597 = vadd.f32 0.0, %v596
        %598 = vdwg.mxu0
        %599 = vmatprep.subr.mxu0 %v487
        %600 = vmatpush1.msra.mxu0 %v486
        %601 = vmatprep.subr.mxu0 %v491
        %602 = vmatpush1.msra.mxu0 %v490
        %603 = vmatprep.subr.mxu0 %v495
        %604 = vmatpush1.msra.mxu0 %v494
        %605 = vmatprep.subr.mxu0 %v499
        %606 = vmatpush1.msra.mxu0 %v498
        %607 = vmatprep.subr.mxu0 %v503
        %608 = vmatpush1.msra.mxu0 %v502
        %609 = vmatprep.subr.mxu0 %v507
        %610 = vmatpush1.msra.mxu0 %v506
        %611 = vmatprep.subr.mxu0 %v511
        %612 = vmatpush1.msra.mxu0 %v510
        %613 = vmatprep.subr.mxu0 %v515
        %614 = vmatpush1.msra.mxu0 %v514
        %615 = vmatprep.subr.mxu0 %v519
        %616 = vmatpush1.msra.mxu0 %v518
        %617 = vmatprep.subr.mxu0 %v523
        %618 = vmatpush1.msra.mxu0 %v522
        %619 = vmatprep.subr.mxu0 %v527
        %620 = vmatpush1.msra.mxu0 %v526
        %621 = vmatprep.subr.mxu0 0.0
        %622 = vmatpush1.msra.mxu0 0.0
        %623 = vmatprep.subr.mxu0 0.0
        %624 = vmatpush1.msra.mxu0 0.0
        %625 = vmatprep.subr.mxu0 0.0
        %626 = vmatpush1.msra.mxu0 0.0
        %627 = vmatprep.subr.mxu0 0.0
        %628 = vmatpush1.msra.mxu0 0.0
        %629 = vmatprep.subr.mxu0 0.0
        %630 = vmatpush1.msra.mxu0 0.0
        %631 = vmatprep.subr.mxu0 0.0
        %632 = vmatpush1.msra.mxu0 0.0
        %633 = vmatprep.subr.mxu0 0.0
        %634 = vmatpush1.msra.mxu0 0.0
        %635 = vmatprep.subr.mxu0 0.0
        %636 = vmatpush1.msra.mxu0 0.0
        %637 = vmatprep.subr.mxu0 0.0
        %638 = vmatpush1.msra.mxu0 0.0
        %639 = vmatprep.subr.mxu0 0.0
        %640 = vmatpush1.msra.mxu0 0.0
        %641 = vmatprep.subr.mxu0 0.0
        %642 = vmatpush1.msra.mxu0 0.0
        %643 = vmatprep.subr.mxu0 0.0
        %644 = vmatpush1.msra.mxu0 0.0
        %645 = vmatprep.subr.mxu0 0.0
        %646 = vmatpush1.msra.mxu0 0.0
        %647 = vmatprep.subr.mxu0 0.0
        %648 = vmatpush1.msra.mxu0 0.0
        %649 = vmatprep.subr.mxu0 0.0
        %650 = vmatpush1.msra.mxu0 0.0
        %651 = vmatprep.subr.mxu0 0.0
        %652 = vmatpush1.msra.mxu0 0.0
        %653 = vmatprep.subr.mxu0 0.0
        %654 = vmatpush1.msra.mxu0 0.0
        %655 = vmatprep.subr.mxu0 0.0
        %656 = vmatpush1.msra.mxu0 0.0
        %657 = vmatprep.subr.mxu0 0.0
        %658 = vmatpush1.msra.mxu0 0.0
        %659 = vmatprep.subr.mxu0 0.0
        %660 = vmatpush1.msra.mxu0 0.0
        %661 = vmatprep.subr.mxu0 0.0
        %662 = vmatpush1.msra.mxu0 0.0
        %663 = vmatprep.mubr.f32.mxu0 0.0
        %664 = vmatmul.mubr.f32.gmra.mrb[0].mxu0 %v340
        %v665 = vpop.f32.mrb[0].mxu0
        %v666 = vadd.f32 0.0, %v665
        %v667 = vpop.f32.mrb[0].mxu0
        %v668 = vadd.f32 0.0, %v667
        %669 = vdwg.mxu0
        %v670 = vld [vmem:[%s3] sm:$0xff]
        %v675 = vrot.slane %v595, 4
        %v676 = vrot.slane %v597, 4
        %v677 = vrot.slane %v666, 4
        %v678 = vrot.slane %v668, 4
        %v683 = vsub.f32 %v409, %v675
        %v684 = vsub.f32 %v411, %v676
        %v685 = vsub.f32 %v480, %v677
        %v686 = vsub.f32 %v482, %v678
        %688 = vset.pattern.permute.xlu0 0
        %689 = vperm.xlu0 %688, %v670
        %v690 = vpop.permute.xlu0 %689
        %v692 = vadd.f32 %v683, %v690
        %v693 = vadd.f32 %v684, %v690
        %v694 = vadd.f32 %v685, %v690
        %v695 = vadd.f32 %v686, %v690
        %696 = vst [vmem:[%s289] sm:$0xf] %v692
        %697 = vst [vmem:[%s289 + $0x8] sm:$0xf] %v693
        %698 = vst [vmem:[%s289 + $0x10] sm:$0xf] %v694
        %699 = vst [vmem:[%s289 + $0x18] sm:$0xf] %v695
        %v704 = vrot.slane %v409, 4
        %v705 = vrot.slane %v411, 4
        %v706 = vrot.slane %v480, 4
        %v707 = vrot.slane %v482, 4
        %v712 = vadd.f32 %v595, %v704
        %v713 = vadd.f32 %v597, %v705
        %v714 = vadd.f32 %v666, %v706
        %v715 = vadd.f32 %v668, %v707
        %v716 = vrot.slane %v690, 4
        %v718 = vadd.f32 %v712, %v716
        %v719 = vadd.f32 %v713, %v716
        %v720 = vadd.f32 %v714, %v716
        %v721 = vadd.f32 %v715, %v716
        %v726 = vrot.slane %v718, 4
        %v727 = vrot.slane %v719, 4
        %v728 = vrot.slane %v720, 4
        %v729 = vrot.slane %v721, 4
        %734 = vst [vmem:[%s289] sm:$0xf0] %v726
        %735 = vst [vmem:[%s289 + $0x8] sm:$0xf0] %v727
        %736 = vst [vmem:[%s289 + $0x10] sm:$0xf0] %v728
        %737 = vst [vmem:[%s289 + $0x18] sm:$0xf0] %v729
        %s738 = sand.u32 %s144, 1
        %s739 = scalar_lea.sflag [#allocation4], %s738
        %s740 = sand.u32 %s144, 1
        %s741 = smul.addr %s740, 32
        %s742 = scalar_lea.vmem [#allocation8], %s741
        // Predicated region
        $region49: #{tpu_custom_call.1} parent=35 // pred_check
          %p743 = pneg %p154
        $region50: #{tpu_custom_call.1} parent=35 // pred_check_branch
          %745 = sbr.rel (%p743) target = $region52
        $region51: #{tpu_custom_call.1} parent=35 // pred_region
          %s746 = smul.u32 4, %s29
          %s748 = ssub.s32 512, 512
          %749 = vsyncadd %s739, %s748
          %s750 = smul.addr %s28, 16
          %s751 = sadd.s32 %s746, %s750
          %s752 = smul.addr %s751, 128
          %s753 = scalar_lea.hbm %s4, %s752
          %s755 = sshll.u32 %s742, 4
          %s756 = int_to_ptr.vmem [resolvable:$true] %s755
          %758 = dma.vmem_to_hbm [thread:$0]  %s756, 512, %s753, %s739
        $region52: #{tpu_custom_call.1} parent=35 // pred_fallthru
          _
      $region36: #{tpu_custom_call.1} parent=5 // pred_fallthru
        _
      %p759 = scmp.le.s32.totalorder 2, %s19
      // Predicated region
      $region53: #{tpu_custom_call.1} parent=5 // pred_check
        %p760 = pneg %p759
      $region54: #{tpu_custom_call.1} parent=5 // pred_check_branch
        %762 = sbr.rel (%p760) target = $region56
      $region55: #{tpu_custom_call.1} parent=5 // pred_region
        %s763 = ssub.s32 %s19, 2
        // Predicated region
        $region57: #{tpu_custom_call.1} parent=55 // pred_check
          %p764 = pneg %p160
        $region58: #{tpu_custom_call.1} parent=55 // pred_check_branch
          %766 = sbr.rel (%p764) target = $region60
        $region59: #{tpu_custom_call.1} parent=55 // pred_region
          %s767 = sand.u32 %s145, 1
          %s768 = scalar_lea.sflag [#allocation4], %s767
          %s769 = sand.u32 %s145, 1
          %s770 = smul.addr %s769, 32
          %s771 = scalar_lea.vmem [#allocation8], %s770
          %772 = dma.done %s768, 512
        $region60: #{tpu_custom_call.1} parent=55 // pred_fallthru
          _
      $region56: #{tpu_custom_call.1} parent=5 // pred_fallthru
        _
    $region6: #{tpu_custom_call.1} parent=1 // loop_footer
      %s23 = sadd.s32 1, %s19
    $region7: #{tpu_custom_call.1} parent=1 // loop_footer_branch
      %18 = sbr.rel target = $region3
    $region8: #{tpu_custom_call.1} parent=1 // loop_exit
      _
    %773 = vsyncpa [#allocation3], 1
    %s774 = scalar_lea.sflag [#allocation3], 1
    %775 = vsyncpa %s774, 1
    %776 = vsyncpa [#allocation6], 1
    %s777 = scalar_lea.sflag [#allocation6], 1
    %778 = vsyncpa %s777, 1
    %779 = vsyncpa [#allocation4], 1
    %s780 = scalar_lea.sflag [#allocation4], 1
    %781 = vsyncpa %s780, 1

</llo_original>
